<compile_context>
chip_gen: v5e
topology: v5e:2x2
jax: 0.10.0
libtpu: 0.0.40
codegen_flags: <defaults>
</compile_context>

<pallas_src>
import functools

import jax
import jax.numpy as jnp
from jax.experimental import pallas as pl
from jax.experimental.pallas import tpu as pltpu


def _round_up(x, m):
    return (x + m - 1) // m * m


def _cdiv(a, b):
    return -(-a // b)


# ---------------------------------------------------------------------------
# Stage 1: HBM-streaming global-average-pool (all the bandwidth lives here).
# ---------------------------------------------------------------------------
def _pool_kernel(img_ref, psum_ref, *, n_chunks, unroll):
    # NOTE: correctness relies on the spatial axis (grid axis 2) staying the
    # innermost "arbitrary" axis: psum_ref is the resident accumulator for one
    # (p, r) output block across its s sweep.
    s = pl.program_id(2)

    @pl.when(s == 0)
    def _init():
        psum_ref[...] = jnp.zeros_like(psum_ref)

    # Lane-wide f32 accumulator, updated with VPU adds over aligned 128-lane
    # slices; the single cross-lane reduce happens once in the head kernel.
    acc = psum_ref[...]
    if n_chunks <= 16:
        for i in range(n_chunks):                      # static unroll
            acc = acc + img_ref[:, i * 128:(i + 1) * 128].astype(jnp.float32)
    else:
        def add_chunk(i, a):
            off = pl.multiple_of(i * 128, 128)
            return a + img_ref[:, pl.ds(off, 128)].astype(jnp.float32)
        acc = jax.lax.fori_loop(0, n_chunks, add_chunk, acc, unroll=unroll)
    psum_ref[...] = acc


# ---------------------------------------------------------------------------
# Stage 2: tiny fused head epilogue (runs once; everything fits in VMEM).
# ---------------------------------------------------------------------------
def _masked_log_softmax(z, mask):
    """log_softmax restricted to the lanes where `mask` is True."""
    zm = jnp.where(mask, z, -jnp.inf)
    m = jnp.max(zm, axis=-1, keepdims=True)
    e = jnp.exp(zm - m)                       # masked lanes -> exp(-inf) = 0
    lse = jnp.log(jnp.sum(e, axis=-1, keepdims=True))
    return z - m - lse


def _heads_kernel(psum_ref, sel_ref, wbt_ref, bb_ref, wh_ref, bh_ref,
                  wdc_ref, wrd_ref, out_ref, *, inv_spatial, kc, kd, kr):
    # single cross-lane reduce of the lane-wide / per-split partial sums
    pooled = jnp.sum(psum_ref[...], axis=-1, keepdims=True) * inv_spatial  # [R,1]
    # fold [B*C] sublane rows back to batch rows with a 0/1 selector matmul
    feats = jnp.dot(sel_ref[...], pooled * wbt_ref[...],
                    preferred_element_type=jnp.float32) + bb_ref[...]
    x = jnp.maximum(feats, 0.0)                                 # relu(backbone)

    # fused heads: z = [crop_pre | disease_base | risk_base | zero-pad]
    z = jnp.dot(x, wh_ref[...], preferred_element_type=jnp.float32) + bh_ref[...]
    # disease_pre = disease_base + relu(crop_pre) @ wdc  (zero-padded weight)
    z = z + jnp.dot(jnp.maximum(z, 0.0), wdc_ref[...],
                    preferred_element_type=jnp.float32)
    # risk_pre = risk_base + relu(disease_pre) @ wrd     (zero-padded weight)
    z = z + jnp.dot(jnp.maximum(z, 0.0), wrd_ref[...],
                    preferred_element_type=jnp.float32)

    # segmented log_softmax over the three (unpadded) lane segments
    lane = jax.lax.broadcasted_iota(jnp.int32, z.shape, 1)
    m_c = lane < kc
    m_d = jnp.logical_and(lane >= kc, lane < kc + kd)
    m_r = jnp.logical_and(lane >= kc + kd, lane < kc + kd + kr)
    out = jnp.where(m_c, _masked_log_softmax(z, m_c), 0.0)
    out = out + jnp.where(m_d, _masked_log_softmax(z, m_d), 0.0)
    out = out + jnp.where(m_r, _masked_log_softmax(z, m_r), 0.0)
    out_ref[...] = out


def efficientnet_base_forward(image, params, *,
                              max_s_tile=65536,
                              target_block_bytes=8 * 1024 * 1024):
    """image: [B, C, H, W] float32 or bfloat16 (NCHW).  Returns 3 log-prob arrays."""
    B, C, H, W = image.shape
    S = H * W
    R = B * C
    D = params["wb"].shape[1]
    Kc = params["wc"].shape[1]
    Kd = params["wdx"].shape[1]
    Kr = params["wrx"].shape[1]
    Ktot = Kc + Kd + Kr
    K_pad = _round_up(Ktot, 128)            # lane-dense epilogue store
    B_pad = _round_up(B, 8)

    itemsize = jnp.dtype(image.dtype).itemsize
    row_mult = 8 * max(1, 4 // itemsize)    # sublane packing: 8 f32 / 16 bf16

    # ---- geometry: rows (B*C) on sublanes, spatial (H*W) on lanes ----------
    n_r = max(1, _cdiv(_round_up(R, row_mult), 128))
    r_tile = _round_up(_cdiv(_round_up(R, row_mult), n_r), row_mult)
    R_pad = n_r * r_tile

    s128 = _round_up(S, 128)
    # v7x megacore: guarantee >= 2 "parallel" blocks even for tiny batches by
    # splitting the spatial axis into independent halves; their partial sums
    # are combined in the head kernel.
    n_p = 2 if (n_r == 1 and s128 >= 2 * 128) else 1
    s_split_min = _round_up(_cdiv(s128, n_p), 128)
    target_lanes = max(128, (target_block_bytes // (r_tile * itemsize)) // 128 * 128)
    s_tile = min(s_split_min, target_lanes, max_s_tile)
    n_s = _cdiv(s_split_min, s_tile)
    S_pad = n_p * n_s * s_tile

    img2d = image.reshape(R, S)
    if (R_pad, S_pad) != (R, S):
        # zero padding leaves the spatial sums unchanged
        img2d = jnp.pad(img2d, ((0, R_pad - R), (0, S_pad - S)))

    # ---- stage 1: streaming pool -------------------------------------------
    in_block_bytes = r_tile * s_tile * itemsize
    out_block_bytes = r_tile * 128 * 4
    # double-buffered image block + output block + slack, capped for v7x's
    # 64 MiB physical VMEM (plenty of headroom on v5e/v6e's 128 MiB).
    vmem_limit = int(min(48 * 1024 * 1024,
                         max(16 * 1024 * 1024,
                             2 * in_block_bytes + 2 * out_block_bytes + (4 << 20))))
    n_chunks = s_tile // 128

    psum = pl.pallas_call(
        functools.partial(_pool_kernel, n_chunks=n_chunks,
                          unroll=max(1, min(8, n_chunks))),
        out_shape=jax.ShapeDtypeStruct((R_pad, n_p * 128), jnp.float32),
        grid=(n_p, n_r, n_s),
        in_specs=[pl.BlockSpec((r_tile, s_tile),
                               lambda p, r, s: (r, p * n_s + s))],
        out_specs=pl.BlockSpec((r_tile, 128), lambda p, r, s: (r, p)),
        compiler_params=pltpu.CompilerParams(
            dimension_semantics=("parallel", "parallel", "arbitrary"),
            vmem_limit_bytes=vmem_limit),
        cost_estimate=pl.CostEstimate(
            flops=int(R_pad) * int(S_pad),
            transcendentals=0,
            bytes_accessed=int(R_pad) * int(S_pad) * int(itemsize)
            + int(R_pad) * int(n_p) * 128 * 4),
    )(img2d)

    # ---- stage 2: fused head epilogue (tiny, grid-less, runs once) ---------
    rows = jnp.arange(R_pad)
    sel = jnp.logical_and(rows[None, :] // C == jnp.arange(B_pad)[:, None],
                          rows[None, :] < R).astype(jnp.float32)   # [B_pad, R_pad]
    wbt = params["wb"][rows % C]                                   # [R_pad, D]

    # fused / zero-padded head weights (tiny; precomputed once in production).
    w_heads = jnp.zeros((D, K_pad), jnp.float32)
    w_heads = w_heads.at[:, :Kc].set(params["wc"])
    w_heads = w_heads.at[:, Kc:Kc + Kd].set(params["wdx"])
    w_heads = w_heads.at[:, Kc + Kd:Ktot].set(params["wrx"])
    b_heads = jnp.zeros((1, K_pad), jnp.float32)
    b_heads = b_heads.at[:, :Kc].set(params["bc"])
    b_heads = b_heads.at[:, Kc:Kc + Kd].set(params["bd"])
    b_heads = b_heads.at[:, Kc + Kd:Ktot].set(params["br"])
    wdc_exp = jnp.zeros((K_pad, K_pad), jnp.float32).at[:Kc, Kc:Kc + Kd].set(params["wdc"])
    wrd_exp = jnp.zeros((K_pad, K_pad), jnp.float32).at[Kc:Kc + Kd, Kc + Kd:Ktot].set(params["wrd"])

    out = pl.pallas_call(
        functools.partial(_heads_kernel, inv_spatial=1.0 / float(S),
                          kc=Kc, kd=Kd, kr=Kr),
        out_shape=jax.ShapeDtypeStruct((B_pad, K_pad), jnp.float32),
    )(psum, sel, wbt, params["bb"], w_heads, b_heads, wdc_exp, wrd_exp)

    out = out[:B]
    return out[:, :Kc], out[:, Kc:Kc + Kd], out[:, Kc + Kd:Ktot]


def make_params(key, C, D, Kc, Kd, Kr):
    ks = jax.random.split(key, 8)
    scale = 0.05
    # PyTorch Linear stores W as [out, in]; we pre-transpose to [in, out] and
    # split the "concat" heads into per-chunk matrices (mathematically equal).
    # NOTE: anyone loading real PyTorch checkpoints must replicate exactly this
    # [:, :D] vs [:, D:] split, or results silently diverge.
    w_crop = scale * jax.random.normal(ks[0], (Kc, D), jnp.float32)
    w_dis = scale * jax.random.normal(ks[1], (Kd, D + Kc), jnp.float32)
    w_risk = scale * jax.random.normal(ks[2], (Kr, D + Kd), jnp.float32)
    return {
        "wb": scale * jax.random.normal(ks[3], (C, D), jnp.float32),
        "bb": scale * jax.random.normal(ks[4], (1, D), jnp.float32),
        "wc": w_crop.T,
        "bc": scale * jax.random.normal(ks[5], (1, Kc), jnp.float32),
        "wdx": w_dis[:, :D].T,
        "wdc": w_dis[:, D:].T,
        "bd": scale * jax.random.normal(ks[6], (1, Kd), jnp.float32),
        "wrx": w_risk[:, :D].T,
        "wrd": w_risk[:, D:].T,
        "br": scale * jax.random.normal(ks[7], (1, Kr), jnp.float32),
    }


def reference_forward(image, params):
    """Pure-JAX reference mirroring the PyTorch forward (with the surrogate backbone)."""
    B, C, H, W = image.shape
    pooled = jnp.mean(image.reshape(B, C, H * W), axis=-1)
    x = jnp.maximum(pooled @ params["wb"] + params["bb"], 0.0)
    crop_pre = x @ params["wc"] + params["bc"]
    disease_pre = (x @ params["wdx"]
                   + jnp.maximum(crop_pre, 0.0) @ params["wdc"] + params["bd"])
    risk_pre = (x @ params["wrx"]
                + jnp.maximum(disease_pre, 0.0) @ params["wrd"] + params["br"])
    return (jax.nn.log_softmax(crop_pre, axis=-1),
            jax.nn.log_softmax(disease_pre, axis=-1),
            jax.nn.log_softmax(risk_pre, axis=-1))


if __name__ == "__main__":
    B, C, H, W = 2, 4, 16, 16      # small NCHW image input
    D, Kc, Kd, Kr = 32, 6, 12, 4   # backbone dim (small), crop/disease/risk heads

    key = jax.random.PRNGKey(0)
    k_img, k_par = jax.random.split(key)
    image = jax.random.normal(k_img, (B, C, H, W), jnp.float32)
    params = make_params(k_par, C, D, Kc, Kd, Kr)

    crop_lp, disease_lp, risk_lp = efficientnet_base_forward(image, params)
    jax.block_until_ready((crop_lp, disease_lp, risk_lp))

    ref_crop, ref_dis, ref_risk = reference_forward(image, params)
    # tolerance accounts for default (bf16-operand) MXU precision differences
    # between the in-kernel matmuls and the XLA reference matmuls.
    assert crop_lp.shape == (B, Kc) and disease_lp.shape == (B, Kd) and risk_lp.shape == (B, Kr)
    assert jnp.allclose(crop_lp, ref_crop, atol=1e-3, rtol=1e-3)
    assert jnp.allclose(disease_lp, ref_dis, atol=1e-3, rtol=1e-3)
    assert jnp.allclose(risk_lp, ref_risk, atol=1e-3, rtol=1e-3)

    print("KERNEL_OK")
</pallas_src>

<mosaic_0001>
module attributes {stable_mosaic.version = 11 : i64} {
  func.func @_pool_kernel(%arg0: i32, %arg1: i32, %arg2: i32, %arg3: memref<8x128xf32, #tpu.memory_space<vmem>>, %arg4: memref<8x128xf32, #tpu.memory_space<vmem>>) attributes {dimension_semantics = [#tpu.dimension_semantics<parallel>, #tpu.dimension_semantics<parallel>, #tpu.dimension_semantics<arbitrary>], iteration_bounds = array<i64: 2, 1, 1>, scalar_prefetch = 0 : i64, scratch_operands = 0 : i64, tpu.core_type = #tpu.core_type<tc>, window_params = [{transform_indices = @transform_0, window_bounds = array<i64: 8, 128>}, {transform_indices = @transform_1, window_bounds = array<i64: 8, 128>}]} {
    %c0_i32 = arith.constant 0 : i32
    %0 = arith.cmpi eq, %arg2, %c0_i32 : i32
    %1 = arith.extui %0 : i1 to i32
    %c0_i32_0 = arith.constant 0 : i32
    %2 = arith.cmpi ne, %1, %c0_i32_0 : i32
    scf.if %2 {
      %cst = arith.constant 0.000000e+00 : f32
      %7 = vector.broadcast %cst : f32 to vector<8x128xf32>
      %c0_6 = arith.constant 0 : index
      %c0_7 = arith.constant 0 : index
      %8 = vector.load %arg4[%c0_6, %c0_7] : memref<8x128xf32, #tpu.memory_space<vmem>>, vector<8x128xf32>
      tpu.vector_store %arg4[%c0_6, %c0_7], %7 {strides = array<i32>} : memref<8x128xf32, #tpu.memory_space<vmem>>, vector<8x128xf32>,
    } else {
    }
    %c0 = arith.constant 0 : index
    %c0_1 = arith.constant 0 : index
    %3 = vector.load %arg4[%c0, %c0_1] : memref<8x128xf32, #tpu.memory_space<vmem>>, vector<8x128xf32>
    %c0_2 = arith.constant 0 : index
    %c0_3 = arith.constant 0 : index
    %4 = vector.load %arg3[%c0_2, %c0_3] : memref<8x128xf32, #tpu.memory_space<vmem>>, vector<8x128xf32>
    %5 = arith.addf %3, %4 : vector<8x128xf32>
    %c0_4 = arith.constant 0 : index
    %c0_5 = arith.constant 0 : index
    %6 = vector.load %arg4[%c0_4, %c0_5] : memref<8x128xf32, #tpu.memory_space<vmem>>, vector<8x128xf32>
    tpu.vector_store %arg4[%c0_4, %c0_5], %5 {strides = array<i32>} : memref<8x128xf32, #tpu.memory_space<vmem>>, vector<8x128xf32>,
    return
  }
  func.func @transform_0(%arg0: i32, %arg1: i32, %arg2: i32) -> (i32, i32) {
    %c1_i32 = arith.constant 1 : i32
    %0 = arith.muli %arg0, %c1_i32 : i32
    %1 = arith.addi %0, %arg2 : i32
    %c0_i32 = arith.constant 0 : i32
    return %arg1, %1 : i32, i32
  }
  func.func @transform_1(%arg0: i32, %arg1: i32, %arg2: i32) -> (i32, i32) {
    %c0_i32 = arith.constant 0 : i32
    return %arg1, %arg0 : i32, i32
  }
}

</mosaic_0001>

<llo_original>
// kernel: tpu_custom_call.1
$region0: #{tpu_custom_call.1}
  #allocation0 [shape = 'u32[]', space=smem, size = 0x4, offset = 0x4, fixed_abs, tag = 'smem constant byte address 0x4 - core index']
  #allocation1 [shape = 'u32[72,128]{1,0:T(1,128)}', space=vmem, size = 0x9000, scoped, tag = 'internal scratch']
  %s0 = inlined_call_operand.hbm [shape: f32[8,256], index: 0, kind: input, shape index: {}]
  %s1 = inlined_call_operand.hbm [shape: f32[8,256], index: 1, kind: output, shape index: {}]
  %s2 = sld [smem:[#allocation0]]
  $region45: #{tpu_custom_call.1} parent=0
    _
  %s4 = ssub.s32 1, %s2
  %s5 = scalar_select 0, %s4, %s2
  $region1: #{tpu_custom_call.1} parent=0
    #allocation2 [shape = 'u8[8192]{0}', space=vmem, size = 0x2000, scoped, tag = 'input window, operand 0']
    #allocation3 [shape = 's32[2]{0}', space=sflag, size = 0x8, scoped, tag = 'scoped memory for tpu_custom_call.1']
    #allocation4 [shape = 's32[2]{0}', space=sflag, size = 0x8, scoped, tag = 'scoped memory for tpu_custom_call.1']
    #allocation5 [shape = 'u8[8192]{0}', space=vmem, size = 0x2000, scoped, tag = 'output window, operand 0']
    %6 = vsyncpa [#allocation3], 0
    %s7 = scalar_lea.sflag [#allocation3], 1
    %8 = vsyncpa %s7, 0
    %9 = vsyncpa [#allocation4], 0
    %s10 = scalar_lea.sflag [#allocation4], 1
    %11 = vsyncpa %s10, 0
    loop: start=0, step=1, limit=4
    $region2: #{tpu_custom_call.1} parent=1 // loop_pre_header
      _
    $region3: #{tpu_custom_call.1} parent=1 // loop_header
      %s13 = sphi 0, %s17
      %p14 = scmp.ge.s32.totalorder %s13, 4
      %s20 = sphi 0, %s39
      %s21 = sphi 0, %s35
      %s22 = sphi 0, %s31
      %s23 = sphi 0, %s20
      %s24 = sphi 0, %s21
      %s25 = sphi 0, %s22
      %s26 = sphi 0, %s23
      %s27 = sphi 0, %s24
      %s28 = sphi 0, %s25
      %s46 = sphi 0, %s48
      %s49 = sphi 0, %s46
      %s50 = sphi 0, %s49
      %s66 = sphi 0, %s50
      %s74 = sphi 0, %s76
      %s77 = sphi 0, %s74
      %s78 = sphi 0, %s77
      %s94 = sphi 0, %s78
    $region4: #{tpu_custom_call.1} parent=1 // loop_header_branch
      %16 = sbr.rel (%p14) target = $region8
    $region5: #{tpu_custom_call.1} parent=1 // loop_body
      %s18 = ssub.s32 %s13, 1
      %s19 = ssub.s32 %s13, 2
      %s29 = sadd.s32 1, %s22
      %p30 = scmp.ge.s32.totalorder %s29, 1
      %s31 = scalar_select %p30, 0, %s29
      %s32 = sadd.s32 1, %s21
      %s33 = scalar_select %p30, %s32, %s21
      %p34 = scmp.ge.s32.totalorder %s33, 1
      %s35 = scalar_select %p34, 0, %s33
      %s36 = sadd.s32 1, %s20
      %s37 = scalar_select %p34, %s36, %s20
      %p38 = scmp.ge.s32.totalorder %s37, 2
      %s39 = scalar_select %p38, 0, %s37
      %s40 = sadd.s32 %s20, %s22
      %s41 = sadd.s32 %s39, %s31
      %s42 = ssub.s32 %s21, %s35
      %s43 = ssub.s32 %s40, %s41
      %s44 = sor.u32 %s42, %s43
      %p45 = scmp.eq.s32.totalorder %s44, 0
      %s47 = sadd.s32 %s46, 1
      %s48 = scalar_select %p45, %s46, %s47
      %p51 = pneg %p45
      %p52 = scmp.eq.s32.totalorder %s13, 1
      %p53 = por %p51, %p52
      %p54 = scmp.ne.s32.totalorder %s46, %s49
      %p55 = scmp.eq.s32.totalorder %s13, 0
      %p56 = por %p54, %p55
      %p57 = scmp.ne.s32.totalorder %s46, %s49
      %p58 = scmp.eq.s32.totalorder %s18, 1
      %p59 = por %p57, %p58
      %p60 = scmp.ne.s32.totalorder %s49, %s50
      %p61 = scmp.eq.s32.totalorder %s18, 0
      %p62 = por %p60, %p61
      %p63 = scmp.ne.s32.totalorder %s49, %s50
      %p64 = scmp.eq.s32.totalorder %s19, 1
      %p65 = por %p63, %p64
      %p67 = scmp.ne.s32.totalorder %s50, %s66
      %p68 = scmp.eq.s32.totalorder %s19, 0
      %p69 = por %p67, %p68
      %s70 = ssub.s32 %s21, %s35
      %s71 = ssub.s32 %s20, %s39
      %s72 = sor.u32 %s70, %s71
      %p73 = scmp.eq.s32.totalorder %s72, 0
      %s75 = sadd.s32 %s74, 1
      %s76 = scalar_select %p73, %s74, %s75
      %p79 = pneg %p73
      %p80 = scmp.eq.s32.totalorder %s13, 1
      %p81 = por %p79, %p80
      %p82 = scmp.ne.s32.totalorder %s74, %s77
      %p83 = scmp.eq.s32.totalorder %s13, 0
      %p84 = por %p82, %p83
      %p85 = scmp.ne.s32.totalorder %s74, %s77
      %p86 = scmp.eq.s32.totalorder %s18, 1
      %p87 = por %p85, %p86
      %p88 = scmp.ne.s32.totalorder %s77, %s78
      %p89 = scmp.eq.s32.totalorder %s18, 0
      %p90 = por %p88, %p89
      %p91 = scmp.ne.s32.totalorder %s77, %s78
      %p92 = scmp.eq.s32.totalorder %s19, 1
      %p93 = por %p91, %p92
      %p95 = scmp.ne.s32.totalorder %s78, %s94
      %p96 = scmp.eq.s32.totalorder %s19, 0
      %p97 = por %p95, %p96
      %p98 = scmp.le.s32.totalorder 1, %s13
      %p99 = scmp.lt.s32.totalorder %s13, 3
      %p100 = pnand %p98, %p99
      %p101 = pneg %p100
      // Predicated region
      $region9: #{tpu_custom_call.1} parent=5 // pred_check
        _
      $region10: #{tpu_custom_call.1} parent=5 // pred_check_branch
        %103 = sbr.rel (%p100) target = $region12
      $region11: #{tpu_custom_call.1} parent=5 // pred_region
        %s104 = ssub.s32 %s13, 1
      $region12: #{tpu_custom_call.1} parent=5 // pred_fallthru
        _
      %p105 = scmp.lt.s32.totalorder %s13, 2
      // Predicated region
      $region13: #{tpu_custom_call.1} parent=5 // pred_check
        %p106 = pneg %p105
      $region14: #{tpu_custom_call.1} parent=5 // pred_check_branch
        %108 = sbr.rel (%p106) target = $region16
      $region15: #{tpu_custom_call.1} parent=5 // pred_region
        // Predicated region
        $region17: #{tpu_custom_call.1} parent=15 // pred_check
          %p109 = pneg %p56
        $region18: #{tpu_custom_call.1} parent=15 // pred_check_branch
          %111 = sbr.rel (%p109) target = $region20
        $region19: #{tpu_custom_call.1} parent=15 // pred_region
          %s112 = sand.u32 %s46, 1
          %s113 = scalar_lea.sflag [#allocation3], %s112
          %s114 = sand.u32 %s46, 1
          %s115 = smul.addr %s114, 8
          %s116 = scalar_lea.vmem [#allocation2], %s115
          %s117 = sadd.s32 %s20, %s22
          %119 = vsyncadd %s113, 0
          %s120 = smul.addr %s21, 2
          %s121 = sadd.s32 %s117, %s120
          %s122 = smul.addr %s121, 8
          %s123 = scalar_lea.hbm %s0, %s122
          %s125 = sshll.u32 %s123, 4
          %s126 = int_to_ptr.hbm [resolvable:$true] %s125
          %s127 = sshll.u32 %s116, 4
          %s128 = int_to_ptr.vmem [resolvable:$true] %s127
          %130 = dma.hbm_to_vmem [thread:$0]  %s126, 128, %s128, %s113
        $region20: #{tpu_custom_call.1} parent=15 // pred_fallthru
          _
      $region16: #{tpu_custom_call.1} parent=5 // pred_fallthru
        _
      %p131 = scmp.le.s32.totalorder 1, %s13
      %p132 = scmp.lt.s32.totalorder %s13, 3
      %p133 = pnand %p131, %p132
      %p134 = pneg %p133
      // Predicated region
      $region21: #{tpu_custom_call.1} parent=5 // pred_check
        _
      $region22: #{tpu_custom_call.1} parent=5 // pred_check_branch
        %136 = sbr.rel (%p133) target = $region24
      $region23: #{tpu_custom_call.1} parent=5 // pred_region
        %s137 = ssub.s32 %s13, 1
        %s138 = sand.u32 %s49, 1
        %s139 = scalar_lea.sflag [#allocation3], %s138
        %s140 = sand.u32 %s49, 1
        %s141 = smul.addr %s140, 8
        %s142 = scalar_lea.vmem [#allocation2], %s141
        // Predicated region
        $region25: #{tpu_custom_call.1} parent=23 // pred_check
          %p143 = pneg %p62
        $region26: #{tpu_custom_call.1} parent=23 // pred_check_branch
          %145 = sbr.rel (%p143) target = $region28
        $region27: #{tpu_custom_call.1} parent=23 // pred_region
          %147 = dma.done %s139, 128
        $region28: #{tpu_custom_call.1} parent=23 // pred_fallthru
          _
        %s148 = sand.u32 %s49, 1
        %s149 = scalar_lea.sflag [#allocation3], %s148
        %s150 = sand.u32 %s49, 1
        %s151 = smul.addr %s150, 8
        %s152 = scalar_lea.vmem [#allocation2], %s151
        %p153 = pneg %p62
        %p154 = pneg %p59
        %p155 = pneg %p90
        %p156 = pneg %p87
        %s157 = sand.u32 %s77, 1
        %s158 = scalar_lea.sflag [#allocation4], %s157
        %s159 = sand.u32 %s77, 1
        %s160 = smul.addr %s159, 8
        %s161 = scalar_lea.vmem [#allocation5], %s160
        %s162 = sadd.s32 %s23, %s25
        %p163 = scmp.eq.s32.totalorder %s25, 0
        // Predicated region
        $region29: #{tpu_custom_call.1} parent=23 // pred_check
          %p164 = pneg %p163
        $region30: #{tpu_custom_call.1} parent=23 // pred_check_branch
          %166 = sbr.rel (%p164) target = $region32
        $region31: #{tpu_custom_call.1} parent=23 // pred_region
          %167 = vst [vmem:[%s161] sm:$0xff] 0.0
        $region32: #{tpu_custom_call.1} parent=23 // pred_fallthru
          _
        %v168 = vld [vmem:[%s161] sm:$0xff]
        %v169 = vld [vmem:[%s142] sm:$0xff]
        %v170 = vadd.f32 %v168, %v169
        %171 = vst [vmem:[%s161] sm:$0xff] %v170
        %s172 = sand.u32 %s77, 1
        %s173 = scalar_lea.sflag [#allocation4], %s172
        %s174 = sand.u32 %s77, 1
        %s175 = smul.addr %s174, 8
        %s176 = scalar_lea.vmem [#allocation5], %s175
        // Predicated region
        $region33: #{tpu_custom_call.1} parent=23 // pred_check
          %p177 = pneg %p87
        $region34: #{tpu_custom_call.1} parent=23 // pred_check_branch
          %179 = sbr.rel (%p177) target = $region36
        $region35: #{tpu_custom_call.1} parent=23 // pred_region
          %181 = vsyncadd %s173, 0
          %s182 = smul.addr %s24, 2
          %s183 = sadd.s32 %s23, %s182
          %s184 = smul.addr %s183, 8
          %s185 = scalar_lea.hbm %s1, %s184
          %s187 = sshll.u32 %s176, 4
          %s188 = int_to_ptr.vmem [resolvable:$true] %s187
          %s189 = sshll.u32 %s185, 4
          %s190 = int_to_ptr.hbm [resolvable:$true] %s189
          %192 = dma.vmem_to_hbm [thread:$0]  %s188, 128, %s190, %s173
        $region36: #{tpu_custom_call.1} parent=23 // pred_fallthru
          _
      $region24: #{tpu_custom_call.1} parent=5 // pred_fallthru
        _
      %p193 = scmp.le.s32.totalorder 2, %s13
      // Predicated region
      $region37: #{tpu_custom_call.1} parent=5 // pred_check
        %p194 = pneg %p193
      $region38: #{tpu_custom_call.1} parent=5 // pred_check_branch
        %196 = sbr.rel (%p194) target = $region40
      $region39: #{tpu_custom_call.1} parent=5 // pred_region
        %s197 = ssub.s32 %s13, 2
        // Predicated region
        $region41: #{tpu_custom_call.1} parent=39 // pred_check
          %p198 = pneg %p93
        $region42: #{tpu_custom_call.1} parent=39 // pred_check_branch
          %200 = sbr.rel (%p198) target = $region44
        $region43: #{tpu_custom_call.1} parent=39 // pred_region
          %s201 = sand.u32 %s78, 1
          %s202 = scalar_lea.sflag [#allocation4], %s201
          %s203 = sand.u32 %s78, 1
          %s204 = smul.addr %s203, 8
          %s205 = scalar_lea.vmem [#allocation5], %s204
          %207 = dma.done %s202, 128
        $region44: #{tpu_custom_call.1} parent=39 // pred_fallthru
          _
      $region40: #{tpu_custom_call.1} parent=5 // pred_fallthru
        _
    $region6: #{tpu_custom_call.1} parent=1 // loop_footer
      %s17 = sadd.s32 1, %s13
    $region7: #{tpu_custom_call.1} parent=1 // loop_footer_branch
      %12 = sbr.rel target = $region3
    $region8: #{tpu_custom_call.1} parent=1 // loop_exit
      _
    %208 = vsyncpa [#allocation3], 1
    %s209 = scalar_lea.sflag [#allocation3], 1
    %210 = vsyncpa %s209, 1
    %211 = vsyncpa [#allocation4], 1
    %s212 = scalar_lea.sflag [#allocation4], 1
    %213 = vsyncpa %s212, 1

</llo_original>
